<compile_context>
chip_gen: v7x
topology: tpu7x:2x2x1
jax: 0.10.0
libtpu: 0.0.40
codegen_flags: <defaults>
</compile_context>

<pallas_src>
import numpy as np
import jax
import jax.numpy as jnp
from jax.experimental import pallas as pl
from jax.experimental.pallas import tpu as pltpu

# ----- module hyper-parameters (constructor args of PhysicsInformedLoss) -----
LAMBDA_PHYSICS = 1e-4      # > 0 so the physics path is exercised
DX = 10.0
DT = 0.002
NORMALIZE_DATA = True
# smooth_data defaults to False in the reference -> smoothing path skipped.
# TODO(synk): separable Gaussian smoothing (smooth_data=True) not implemented.

_VMEM_LIMIT_BYTES = 32 * 1024 * 1024     # safe on v5e/v6e/v7x
_BLOCK_BUDGET_BYTES = 8 << 20            # per-grid-step footprint target


def _ceil_to(x, m):
    return ((x + m - 1) // m) * m


# -------------------- fused MSE + physics-residual kernel --------------------
def _make_fused_kernel(Bblk, R, T, Nx_s, Ny_v, Nxi, dt, normalize):
    inv_dt2 = 1.0 / (dt * dt)
    inv_r = 1.0 / float(R)
    ny_int = float(Ny_v - 2)

    def kernel(seis_ref, wint_ref, wxx_ref, pred_ref, targ_ref,
               mse_ref, phys_ref):
        # ---- velocity tile: load once, reuse for MSE and physics ----
        p = pred_ref[...]                                   # [Bblk, Ny_v, Nx_v]
        d = p - targ_ref[...]
        mse_part = jnp.sum(d * d)

        # ---- receiver mean (R small & static -> unrolled vector adds) ----
        acc = seis_ref[:, 0]                                # [Bblk, T, Nx_s]
        for r in range(1, R):
            acc = acc + seis_ref[:, r]
        wf = acc * inv_r

        # ---- per-batch abs-max normalization (reciprocal on the tiny max) ----
        if normalize:
            m = jnp.max(jnp.abs(wf), axis=1, keepdims=True)   # [Bblk,1,Nx_s]
            m = jnp.max(m, axis=2, keepdims=True)             # [Bblk,1,1]
            wf = wf * pl.reciprocal(jnp.maximum(m, 1e-10), approx=True)

        # ---- bilinear resize + x-Laplacian as two 2-D MXU matmuls ----
        # Source width along Ny is 1 => resized field is constant along Ny,
        # so only interior-x columns are needed and f_yy == 0.
        wf2d = wf.reshape(Bblk * T, Nx_s)                     # rows = Bblk*T
        u_int = jnp.dot(wf2d, wint_ref[...],
                        preferred_element_type=jnp.float32)   # [Bblk*T, Nxi]
        lap2d = jnp.dot(wf2d, wxx_ref[...],
                        preferred_element_type=jnp.float32)   # [Bblk*T, Nxi]
        u_int = u_int.reshape(Bblk, T, Nxi)
        lap = lap2d.reshape(Bblk, T, Nxi)[:, :T - 2, :]       # spatial term @ t

        # ---- second time derivative (centered at t+1, as in the reference) ----
        u_tt = (u_int[:, 2:, :] - 2.0 * u_int[:, 1:-1, :]
                + u_int[:, :-2, :]) * inv_dt2                 # [Bblk, T-2, Nxi]

        # ---- velocity moments over interior y (summed analytically) ----
        vel = p * (5000.0 - 1500.0) + 1500.0                  # physical velocity
        vel_int = jnp.clip(vel[:, 1:-1, 1:-1], 100.0, 10000.0)
        vt = 1.0 / (vel_int * vel_int)                        # [Bblk, Ny-2, Nxi]
        s1 = jnp.sum(vt, axis=1, keepdims=True)               # [Bblk, 1, Nxi]
        s2 = jnp.sum(vt * vt, axis=1, keepdims=True)

        # sum_y res^2 = (Ny-2)*lap^2 - 2*lap*u_tt*S1 + u_tt^2*S2
        phys_part = (ny_int * jnp.sum(lap * lap)
                     - 2.0 * jnp.sum(lap * u_tt * s1)
                     + jnp.sum(u_tt * u_tt * s2))

        mse_ref[...] = jnp.broadcast_to(mse_part, mse_ref.shape)
        phys_ref[...] = jnp.broadcast_to(phys_part, phys_ref.shape)

    return kernel


def _pick_batch_block(B, R, T, Nx_s, Nx_v, Ny_v,
                      budget_bytes=_BLOCK_BUDGET_BYTES):
    """Batch block whose padded + double-buffered per-step f32 footprint stays
    under `budget_bytes`; capped so there are >= 2 grid steps when B >= 2 (so
    v7x's two TensorCores both get work)."""
    Tp = _ceil_to(T, 8)
    Nxsp = _ceil_to(Nx_s, 128)
    Nxvp = _ceil_to(Nx_v, 128)
    Nxip = _ceil_to(max(Nx_v - 2, 1), 128)
    Nyp = _ceil_to(Ny_v, 8)
    per_b = 4 * (2 * R * Tp * Nxsp          # seismic block (double buffered)
                 + 2 * 2 * Nyp * Nxvp       # pred + target blocks (dbl buffered)
                 + Tp * Nxsp                # wf intermediate
                 + 4 * Tp * Nxip)           # u / lap / u_tt temporaries
    bblk = int(max(1, min(B, budget_bytes // max(per_b, 1))))
    if B >= 2:
        bblk = min(bblk, -(-B // 2))        # >= 2 grid steps for v7x megacore
    return bblk


def _bilinear_interp_matrix(in_size, out_size):
    """1-D weights of F.interpolate(mode='bilinear', align_corners=False),
    laid out [in_size, out_size] so the kernel contracts on the row axis."""
    scale = in_size / out_size
    W = np.zeros((in_size, out_size), dtype=np.float32)
    for i in range(out_size):
        src = max((i + 0.5) * scale - 0.5, 0.0)
        i0 = min(int(np.floor(src)), in_size - 1)
        i1 = min(i0 + 1, in_size - 1)
        w1 = src - i0
        W[i0, i] += 1.0 - w1
        W[i1, i] += w1
    return W


def fused_loss_sums(pred_vel, target_vel, seismic, dx, dt, normalize):
    """Returns (sum((pred-target)^2), sum(wave-equation residual^2))."""
    B, R, T, Nx_s = seismic.shape
    Nx_v, Ny_v = pred_vel.shape[2], pred_vel.shape[3]
    Nxi = Nx_v - 2

    # y-major layout so the velocity moments (reductions over y) land with x on
    # the lane axis, matching the wavefield arrays.  MSE is transpose-invariant.
    pred_t = jnp.transpose(pred_vel.reshape(B, Nx_v, Ny_v), (0, 2, 1)).astype(jnp.float32)
    targ_t = jnp.transpose(target_vel.reshape(B, Nx_v, Ny_v), (0, 2, 1)).astype(jnp.float32)
    seis = seismic.astype(jnp.float32)

    # Host-side interpolation matrices; x-Laplacian folded into W on the host.
    W = _bilinear_interp_matrix(Nx_s, Nx_v)                    # [Nx_s, Nx_v]
    w_int = jnp.asarray(W[:, 1:-1])                            # [Nx_s, Nxi]
    w_xx = jnp.asarray((W[:, 2:] - 2.0 * W[:, 1:-1] + W[:, :-2]) / (dx * dx))

    bblk = _pick_batch_block(B, R, T, Nx_s, Nx_v, Ny_v)
    nblk = -(-B // bblk)
    b_pad = nblk * bblk
    if b_pad != B:
        # Zero-padded batches contribute exactly 0 to both partial sums.
        seis = jnp.pad(seis, ((0, b_pad - B), (0, 0), (0, 0), (0, 0)))
        pred_t = jnp.pad(pred_t, ((0, b_pad - B), (0, 0), (0, 0)))
        targ_t = jnp.pad(targ_t, ((0, b_pad - B), (0, 0), (0, 0)))

    mse_parts, phys_parts = pl.pallas_call(
        _make_fused_kernel(bblk, R, T, Nx_s, Ny_v, Nxi, dt, normalize),
        out_shape=(jax.ShapeDtypeStruct((nblk, 8, 128), jnp.float32),
                   jax.ShapeDtypeStruct((nblk, 8, 128), jnp.float32)),
        grid=(nblk,),
        in_specs=[
            pl.BlockSpec((bblk, R, T, Nx_s), lambda b: (b, 0, 0, 0)),
            pl.BlockSpec((Nx_s, Nxi), lambda b: (0, 0)),
            pl.BlockSpec((Nx_s, Nxi), lambda b: (0, 0)),
            pl.BlockSpec((bblk, Ny_v, Nx_v), lambda b: (b, 0, 0)),
            pl.BlockSpec((bblk, Ny_v, Nx_v), lambda b: (b, 0, 0)),
        ],
        out_specs=(pl.BlockSpec((1, 8, 128), lambda b: (b, 0, 0)),
                   pl.BlockSpec((1, 8, 128), lambda b: (b, 0, 0))),
        compiler_params=pltpu.CompilerParams(
            dimension_semantics=("parallel",),
            vmem_limit_bytes=_VMEM_LIMIT_BYTES),
    )(seis, w_int, w_xx, pred_t, targ_t)

    return jnp.sum(mse_parts[:, 0, 0]), jnp.sum(phys_parts[:, 0, 0])


# ----------------- stand-alone MSE kernel (lambda_physics == 0) ---------------
def _mse_block_kernel(p_ref, t_ref, out_ref):
    d = p_ref[...] - t_ref[...]
    out_ref[...] = jnp.broadcast_to(jnp.sum(d * d), out_ref.shape)


def mse_loss(pred, target, budget_bytes=_BLOCK_BUDGET_BYTES):
    shp = pred.shape
    n = int(np.prod(shp))
    B = shp[0]
    rows = int(np.prod(shp[1:-1])) if len(shp) > 2 else 1
    cols = shp[-1]
    p = pred.reshape(B, rows, cols).astype(jnp.float32)
    t = target.reshape(B, rows, cols).astype(jnp.float32)

    per_b = 4 * 2 * 2 * _ceil_to(rows, 8) * _ceil_to(cols, 128)
    bblk = int(max(1, min(B, budget_bytes // max(per_b, 1))))
    if B >= 2:
        bblk = min(bblk, -(-B // 2))        # keep >= 2 blocks for v7x megacore
    nblk = -(-B // bblk)
    b_pad = nblk * bblk
    if b_pad != B:
        p = jnp.pad(p, ((0, b_pad - B), (0, 0), (0, 0)))
        t = jnp.pad(t, ((0, b_pad - B), (0, 0), (0, 0)))

    parts = pl.pallas_call(
        _mse_block_kernel,
        out_shape=jax.ShapeDtypeStruct((nblk, 8, 128), jnp.float32),
        grid=(nblk,),
        in_specs=[pl.BlockSpec((bblk, rows, cols), lambda b: (b, 0, 0)),
                  pl.BlockSpec((bblk, rows, cols), lambda b: (b, 0, 0))],
        out_specs=pl.BlockSpec((1, 8, 128), lambda b: (b, 0, 0)),
        compiler_params=pltpu.CompilerParams(
            dimension_semantics=("parallel",),
            vmem_limit_bytes=_VMEM_LIMIT_BYTES),
    )(p, t)
    return jnp.sum(parts[:, 0, 0]) / float(n)


# ------------------------------ forward pass ----------------------------------
def physics_informed_loss(predicted_velocity, target_velocity, seismic_data,
                          lambda_physics=LAMBDA_PHYSICS, dx=DX, dt=DT,
                          normalize_data=NORMALIZE_DATA):
    # TODO(synk): bilinear resize of pred to target's shape (when shapes differ)
    # and the 5-D seismic branch are not implemented.
    assert predicted_velocity.shape == target_velocity.shape
    B, C, Nx_v, Ny_v = predicted_velocity.shape
    assert C == 1

    if lambda_physics > 0:
        assert seismic_data.ndim == 4
        _, _, T, _ = seismic_data.shape
        # TODO(synk): the reference's T < 3 zero-derivative fallback is not implemented.
        assert T >= 3 and Nx_v >= 3 and Ny_v >= 3

        mse_sum, phys_sum = fused_loss_sums(predicted_velocity, target_velocity,
                                            seismic_data, dx, dt, normalize_data)
        mse = mse_sum / float(B * C * Nx_v * Ny_v)
        physics = phys_sum / float(B * (T - 2) * (Nx_v - 2) * (Ny_v - 2))
        physics = jnp.minimum(physics, 10000.0)            # clamp(max=10000)
        physics_weighted = lambda_physics * physics
    else:
        mse = mse_loss(predicted_velocity, target_velocity)
        physics_weighted = jnp.float32(0.0)

    total = mse + physics_weighted
    return total, mse, physics_weighted


# ------------------------------------ main ------------------------------------
if __name__ == "__main__":
    key = jax.random.PRNGKey(0)
    k1, k2, k3 = jax.random.split(key, 3)

    B, Nx_v, Ny_v = 2, 16, 16      # velocity model size
    R, T, Nx_s = 3, 8, 12          # receivers, time steps, seismic spatial dim

    predicted_velocity = jax.random.uniform(k1, (B, 1, Nx_v, Ny_v),
                                            dtype=jnp.float32)
    target_velocity = jax.random.uniform(k2, (B, 1, Nx_v, Ny_v),
                                         dtype=jnp.float32)
    seismic_data = jax.random.normal(k3, (B, R, T, Nx_s), dtype=jnp.float32)

    loss_fn = jax.jit(physics_informed_loss)                       # physics path
    mse_only_fn = jax.jit(
        lambda p, t, s: physics_informed_loss(p, t, s, lambda_physics=0.0))

    total, mse, physics_w = loss_fn(predicted_velocity, target_velocity,
                                    seismic_data)
    total0, mse0, physics0 = mse_only_fn(predicted_velocity, target_velocity,
                                         seismic_data)
    jax.block_until_ready((total, mse, physics_w, total0, mse0, physics0))

    print("KERNEL_OK")
</pallas_src>

<mosaic_0001>
module attributes {stable_mosaic.version = 11 : i64} {
  func.func @kernel(%arg0: i32, %arg1: memref<1x3x8x12xf32, #tpu.memory_space<vmem>>, %arg2: memref<12x14xf32, #tpu.memory_space<vmem>>, %arg3: memref<12x14xf32, #tpu.memory_space<vmem>>, %arg4: memref<1x16x16xf32, #tpu.memory_space<vmem>>, %arg5: memref<1x16x16xf32, #tpu.memory_space<vmem>>, %arg6: memref<1x8x128xf32, #tpu.memory_space<vmem>>, %arg7: memref<1x8x128xf32, #tpu.memory_space<vmem>>) attributes {dimension_semantics = [#tpu.dimension_semantics<parallel>], iteration_bounds = array<i64: 2>, scalar_prefetch = 0 : i64, scratch_operands = 0 : i64, tpu.core_type = #tpu.core_type<tc>, window_params = [{transform_indices = @transform_0, window_bounds = array<i64: 1, 3, 8, 12>}, {pipeline_mode = #tpu.pipeline_mode<synchronous>, transform_indices = @transform_1, window_bounds = array<i64: 12, 14>}, {pipeline_mode = #tpu.pipeline_mode<synchronous>, transform_indices = @transform_2, window_bounds = array<i64: 12, 14>}, {transform_indices = @transform_3, window_bounds = array<i64: 1, 16, 16>}, {transform_indices = @transform_4, window_bounds = array<i64: 1, 16, 16>}, {transform_indices = @transform_5, window_bounds = array<i64: 1, 8, 128>}, {transform_indices = @transform_6, window_bounds = array<i64: 1, 8, 128>}]} {
    %c0 = arith.constant 0 : index
    %c0_0 = arith.constant 0 : index
    %c0_1 = arith.constant 0 : index
    %0 = vector.load %arg4[%c0, %c0_0, %c0_1] : memref<1x16x16xf32, #tpu.memory_space<vmem>>, vector<1x16x16xf32>
    %c0_2 = arith.constant 0 : index
    %c0_3 = arith.constant 0 : index
    %c0_4 = arith.constant 0 : index
    %1 = vector.load %arg5[%c0_2, %c0_3, %c0_4] : memref<1x16x16xf32, #tpu.memory_space<vmem>>, vector<1x16x16xf32>
    %2 = arith.subf %0, %1 : vector<1x16x16xf32>
    %3 = arith.mulf %2, %2 : vector<1x16x16xf32>
    %4 = vector.shape_cast %3 : vector<1x16x16xf32> to vector<1x1x16x16xf32>
    %cst = arith.constant dense<0.000000e+00> : vector<1xf32>
    %5 = vector.multi_reduction <add>, %4, %cst [1, 2, 3] : vector<1x1x16x16xf32> to vector<1xf32>
    %6 = vector.shape_cast %5 : vector<1xf32> to vector<1x1x1x1xf32>
    %7 = vector.extract %6[0, 0, 0, 0] : f32 from vector<1x1x1x1xf32>
    %c0_5 = arith.constant 0 : index
    %c0_6 = arith.constant 0 : index
    %c0_7 = arith.constant 0 : index
    %c0_8 = arith.constant 0 : index
    %8 = vector.load %arg1[%c0_5, %c0_6, %c0_7, %c0_8] : memref<1x3x8x12xf32, #tpu.memory_space<vmem>>, vector<1x1x8x12xf32>
    %9 = vector.shape_cast %8 : vector<1x1x8x12xf32> to vector<1x8x12xf32>
    %c0_9 = arith.constant 0 : index
    %c1 = arith.constant 1 : index
    %c0_10 = arith.constant 0 : index
    %c0_11 = arith.constant 0 : index
    %10 = vector.load %arg1[%c0_9, %c1, %c0_10, %c0_11] : memref<1x3x8x12xf32, #tpu.memory_space<vmem>>, vector<1x1x8x12xf32>
    %11 = vector.shape_cast %10 : vector<1x1x8x12xf32> to vector<1x8x12xf32>
    %12 = arith.addf %9, %11 : vector<1x8x12xf32>
    %c0_12 = arith.constant 0 : index
    %c2 = arith.constant 2 : index
    %c0_13 = arith.constant 0 : index
    %c0_14 = arith.constant 0 : index
    %13 = vector.load %arg1[%c0_12, %c2, %c0_13, %c0_14] : memref<1x3x8x12xf32, #tpu.memory_space<vmem>>, vector<1x1x8x12xf32>
    %14 = vector.shape_cast %13 : vector<1x1x8x12xf32> to vector<1x8x12xf32>
    %15 = arith.addf %12, %14 : vector<1x8x12xf32>
    %cst_15 = arith.constant 0.333333343 : f32
    %16 = vector.broadcast %cst_15 : f32 to vector<1x8x12xf32>
    %17 = arith.mulf %15, %16 : vector<1x8x12xf32>
    %18 = math.absf %17 : vector<1x8x12xf32>
    %cst_16 = arith.constant dense<0xFF800000> : vector<1x12xf32>
    %19 = vector.multi_reduction <maximumf>, %18, %cst_16 [1] : vector<1x8x12xf32> to vector<1x12xf32>
    %20 = vector.shape_cast %19 : vector<1x12xf32> to vector<1x1x12xf32>
    %cst_17 = arith.constant dense<0xFF800000> : vector<1x1xf32>
    %21 = vector.multi_reduction <maximumf>, %20, %cst_17 [2] : vector<1x1x12xf32> to vector<1x1xf32>
    %22 = vector.shape_cast %21 : vector<1x1xf32> to vector<1x1x1xf32>
    %cst_18 = arith.constant 1.000000e-10 : f32
    %23 = vector.broadcast %cst_18 : f32 to vector<1x1x1xf32>
    %24 = arith.maximumf %22, %23 : vector<1x1x1xf32>
    %25 = tpu.reciprocal %24 {approx = true} : vector<1x1x1xf32> -> vector<1x1x1xf32>
    %26 = vector.broadcast %25 : vector<1x1x1xf32> to vector<1x8x12xf32>
    %27 = arith.mulf %17, %26 : vector<1x8x12xf32>
    %28 = vector.shape_cast %27 : vector<1x8x12xf32> to vector<8x12xf32>
    %c0_19 = arith.constant 0 : index
    %c0_20 = arith.constant 0 : index
    %29 = vector.load %arg2[%c0_19, %c0_20] : memref<12x14xf32, #tpu.memory_space<vmem>>, vector<12x14xf32>
    %cst_21 = arith.constant dense<0.000000e+00> : vector<8x14xf32>
    %30 = tpu.matmul %28, %29, %cst_21 {dimension_numbers = #tpu.dot_dimension_numbers<[1], [0], [0], [1], [0, 0, 1, 1], [], []>} : vector<8x12xf32>, vector<12x14xf32>, vector<8x14xf32> -> vector<8x14xf32>
    %c0_22 = arith.constant 0 : index
    %c0_23 = arith.constant 0 : index
    %31 = vector.load %arg3[%c0_22, %c0_23] : memref<12x14xf32, #tpu.memory_space<vmem>>, vector<12x14xf32>
    %cst_24 = arith.constant dense<0.000000e+00> : vector<8x14xf32>
    %32 = tpu.matmul %28, %31, %cst_24 {dimension_numbers = #tpu.dot_dimension_numbers<[1], [0], [0], [1], [0, 0, 1, 1], [], []>} : vector<8x12xf32>, vector<12x14xf32>, vector<8x14xf32> -> vector<8x14xf32>
    %33 = vector.shape_cast %30 : vector<8x14xf32> to vector<1x8x14xf32>
    %34 = vector.shape_cast %32 : vector<8x14xf32> to vector<1x8x14xf32>
    %35 = vector.extract_strided_slice %34 {offsets = [0, 0, 0], sizes = [1, 6, 14], strides = [1, 1, 1]} : vector<1x8x14xf32> to vector<1x6x14xf32>
    %36 = vector.extract_strided_slice %33 {offsets = [0, 2, 0], sizes = [1, 6, 14], strides = [1, 1, 1]} : vector<1x8x14xf32> to vector<1x6x14xf32>
    %37 = vector.extract_strided_slice %33 {offsets = [0, 1, 0], sizes = [1, 6, 14], strides = [1, 1, 1]} : vector<1x8x14xf32> to vector<1x6x14xf32>
    %cst_25 = arith.constant 2.000000e+00 : f32
    %38 = vector.broadcast %cst_25 : f32 to vector<1x6x14xf32>
    %39 = arith.mulf %38, %37 : vector<1x6x14xf32>
    %40 = arith.subf %36, %39 : vector<1x6x14xf32>
    %41 = vector.extract_strided_slice %33 {offsets = [0, 0, 0], sizes = [1, 6, 14], strides = [1, 1, 1]} : vector<1x8x14xf32> to vector<1x6x14xf32>
    %42 = arith.addf %40, %41 : vector<1x6x14xf32>
    %cst_26 = arith.constant 2.500000e+05 : f32
    %43 = vector.broadcast %cst_26 : f32 to vector<1x6x14xf32>
    %44 = arith.mulf %42, %43 : vector<1x6x14xf32>
    %cst_27 = arith.constant 3.500000e+03 : f32
    %45 = vector.broadcast %cst_27 : f32 to vector<1x16x16xf32>
    %46 = arith.mulf %0, %45 : vector<1x16x16xf32>
    %cst_28 = arith.constant 1.500000e+03 : f32
    %47 = vector.broadcast %cst_28 : f32 to vector<1x16x16xf32>
    %48 = arith.addf %46, %47 : vector<1x16x16xf32>
    %49 = vector.extract_strided_slice %48 {offsets = [0, 1, 1], sizes = [1, 14, 14], strides = [1, 1, 1]} : vector<1x16x16xf32> to vector<1x14x14xf32>
    %cst_29 = arith.constant 1.000000e+02 : f32
    %cst_30 = arith.constant 1.000000e+04 : f32
    %50 = vector.broadcast %cst_29 : f32 to vector<1x14x14xf32>
    %51 = arith.maximumf %50, %49 : vector<1x14x14xf32>
    %52 = vector.broadcast %cst_30 : f32 to vector<1x14x14xf32>
    %53 = arith.minimumf %52, %51 : vector<1x14x14xf32>
    %54 = arith.mulf %53, %53 : vector<1x14x14xf32>
    %cst_31 = arith.constant 1.000000e+00 : f32
    %55 = vector.broadcast %cst_31 : f32 to vector<1x14x14xf32>
    %56 = arith.divf %55, %54 : vector<1x14x14xf32>
    %cst_32 = arith.constant dense<0.000000e+00> : vector<1x14xf32>
    %57 = vector.multi_reduction <add>, %56, %cst_32 [1] : vector<1x14x14xf32> to vector<1x14xf32>
    %58 = vector.shape_cast %57 : vector<1x14xf32> to vector<1x1x14xf32>
    %59 = arith.mulf %56, %56 : vector<1x14x14xf32>
    %cst_33 = arith.constant dense<0.000000e+00> : vector<1x14xf32>
    %60 = vector.multi_reduction <add>, %59, %cst_33 [1] : vector<1x14x14xf32> to vector<1x14xf32>
    %61 = vector.shape_cast %60 : vector<1x14xf32> to vector<1x1x14xf32>
    %62 = arith.mulf %35, %35 : vector<1x6x14xf32>
    %63 = vector.shape_cast %62 : vector<1x6x14xf32> to vector<1x1x6x14xf32>
    %cst_34 = arith.constant dense<0.000000e+00> : vector<1xf32>
    %64 = vector.multi_reduction <add>, %63, %cst_34 [1, 2, 3] : vector<1x1x6x14xf32> to vector<1xf32>
    %65 = vector.shape_cast %64 : vector<1xf32> to vector<1x1x1x1xf32>
    %66 = vector.extract %65[0, 0, 0, 0] : f32 from vector<1x1x1x1xf32>
    %cst_35 = arith.constant 1.400000e+01 : f32
    %67 = arith.mulf %cst_35, %66 : f32
    %68 = arith.mulf %35, %44 : vector<1x6x14xf32>
    %69 = vector.broadcast %58 : vector<1x1x14xf32> to vector<1x6x14xf32>
    %70 = arith.mulf %68, %69 : vector<1x6x14xf32>
    %71 = vector.shape_cast %70 : vector<1x6x14xf32> to vector<1x1x6x14xf32>
    %cst_36 = arith.constant dense<0.000000e+00> : vector<1xf32>
    %72 = vector.multi_reduction <add>, %71, %cst_36 [1, 2, 3] : vector<1x1x6x14xf32> to vector<1xf32>
    %73 = vector.shape_cast %72 : vector<1xf32> to vector<1x1x1x1xf32>
    %74 = vector.extract %73[0, 0, 0, 0] : f32 from vector<1x1x1x1xf32>
    %cst_37 = arith.constant 2.000000e+00 : f32
    %75 = arith.mulf %cst_37, %74 : f32
    %76 = arith.subf %67, %75 : f32
    %77 = arith.mulf %44, %44 : vector<1x6x14xf32>
    %78 = vector.broadcast %61 : vector<1x1x14xf32> to vector<1x6x14xf32>
    %79 = arith.mulf %77, %78 : vector<1x6x14xf32>
    %80 = vector.shape_cast %79 : vector<1x6x14xf32> to vector<1x1x6x14xf32>
    %cst_38 = arith.constant dense<0.000000e+00> : vector<1xf32>
    %81 = vector.multi_reduction <add>, %80, %cst_38 [1, 2, 3] : vector<1x1x6x14xf32> to vector<1xf32>
    %82 = vector.shape_cast %81 : vector<1xf32> to vector<1x1x1x1xf32>
    %83 = vector.extract %82[0, 0, 0, 0] : f32 from vector<1x1x1x1xf32>
    %84 = arith.addf %76, %83 : f32
    %85 = vector.broadcast %7 : f32 to vector<1x8x128xf32>
    %c0_39 = arith.constant 0 : index
    %c0_40 = arith.constant 0 : index
    %c0_41 = arith.constant 0 : index
    %86 = vector.load %arg6[%c0_39, %c0_40, %c0_41] : memref<1x8x128xf32, #tpu.memory_space<vmem>>, vector<1x8x128xf32>
    tpu.vector_store %arg6[%c0_39, %c0_40, %c0_41], %85 {strides = array<i32>} : memref<1x8x128xf32, #tpu.memory_space<vmem>>, vector<1x8x128xf32>,
    %87 = vector.broadcast %84 : f32 to vector<1x8x128xf32>
    %c0_42 = arith.constant 0 : index
    %c0_43 = arith.constant 0 : index
    %c0_44 = arith.constant 0 : index
    %88 = vector.load %arg7[%c0_42, %c0_43, %c0_44] : memref<1x8x128xf32, #tpu.memory_space<vmem>>, vector<1x8x128xf32>
    tpu.vector_store %arg7[%c0_42, %c0_43, %c0_44], %87 {strides = array<i32>} : memref<1x8x128xf32, #tpu.memory_space<vmem>>, vector<1x8x128xf32>,
    return
  }
  func.func @transform_0(%arg0: i32) -> (i32, i32, i32, i32) {
    %c0_i32 = arith.constant 0 : i32
    %c0_i32_0 = arith.constant 0 : i32
    %c0_i32_1 = arith.constant 0 : i32
    %c0_i32_2 = arith.constant 0 : i32
    return %arg0, %c0_i32, %c0_i32_0, %c0_i32_1 : i32, i32, i32, i32
  }
  func.func @transform_1(%arg0: i32) -> (i32, i32) {
    %c0_i32 = arith.constant 0 : i32
    %c0_i32_0 = arith.constant 0 : i32
    %c0_i32_1 = arith.constant 0 : i32
    return %c0_i32, %c0_i32_0 : i32, i32
  }
  func.func @transform_2(%arg0: i32) -> (i32, i32) {
    %c0_i32 = arith.constant 0 : i32
    %c0_i32_0 = arith.constant 0 : i32
    %c0_i32_1 = arith.constant 0 : i32
    return %c0_i32, %c0_i32_0 : i32, i32
  }
  func.func @transform_3(%arg0: i32) -> (i32, i32, i32) {
    %c0_i32 = arith.constant 0 : i32
    %c0_i32_0 = arith.constant 0 : i32
    %c0_i32_1 = arith.constant 0 : i32
    return %arg0, %c0_i32, %c0_i32_0 : i32, i32, i32
  }
  func.func @transform_4(%arg0: i32) -> (i32, i32, i32) {
    %c0_i32 = arith.constant 0 : i32
    %c0_i32_0 = arith.constant 0 : i32
    %c0_i32_1 = arith.constant 0 : i32
    return %arg0, %c0_i32, %c0_i32_0 : i32, i32, i32
  }
  func.func @transform_5(%arg0: i32) -> (i32, i32, i32) {
    %c0_i32 = arith.constant 0 : i32
    %c0_i32_0 = arith.constant 0 : i32
    %c0_i32_1 = arith.constant 0 : i32
    return %arg0, %c0_i32, %c0_i32_0 : i32, i32, i32
  }
  func.func @transform_6(%arg0: i32) -> (i32, i32, i32) {
    %c0_i32 = arith.constant 0 : i32
    %c0_i32_0 = arith.constant 0 : i32
    %c0_i32_1 = arith.constant 0 : i32
    return %arg0, %c0_i32, %c0_i32_0 : i32, i32, i32
  }
}

</mosaic_0001>

<llo_original>
// kernel: physics_informed_loss.1
$region0: #{physics_informed_loss.1}
  #allocation0 [shape = 'u32[]', space=smem, size = 0x4, offset = 0x4, fixed_abs, tag = 'smem constant byte address 0x4 - core index']
  #allocation1 [shape = 'u32[144,128]{1,0:T(1,128)}', space=vmem, size = 0x12000, scoped, tag = 'internal scratch']
  %s0 = inlined_call_operand.vmem [shape: f32[2,3,8,12], index: 0, kind: input, shape index: {}]
  %s1 = inlined_call_operand.vmem [shape: f32[12,14], index: 1, kind: input, shape index: {}]
  %s2 = inlined_call_operand.vmem [shape: f32[12,14], index: 2, kind: input, shape index: {}]
  %s3 = inlined_call_operand.vmem [shape: f32[2,16,16], index: 3, kind: input, shape index: {}]
  %s4 = inlined_call_operand.vmem [shape: f32[2,16,16], index: 4, kind: input, shape index: {}]
  %s5 = inlined_call_operand.vmem [shape: f32[2,8,128], index: 5, kind: output, shape index: {0}]
  %s6 = inlined_call_operand.vmem [shape: f32[2,8,128], index: 6, kind: output, shape index: {1}]
  %7 = xla_tuple %s5, %s6
  %s8 = sld [smem:[#allocation0]]
  $region61: #{physics_informed_loss.1} parent=0
    _
  %s10 = ssub.s32 1, %s8
  %s11 = scalar_select 0, %s10, %s8
  loop: start=0, step=1, limit=4
  $region2: #{physics_informed_loss.1} parent=0 // loop_pre_header
    _
  $region3: #{physics_informed_loss.1} parent=0 // loop_header
    %s13 = sphi 0, %s17
    %p14 = scmp.ge.s32.totalorder %s13, 4
    %s23 = sphi 0, %s25
    %s26 = sphi 0, %s23
    %s27 = sphi 0, %s26
    %s43 = sphi 0, %s27
    %s47 = sphi 0, %s47
    %s49 = sphi 0, %s47
    %s50 = sphi 0, %s49
    %s64 = sphi 0, %s50
    %s68 = sphi 0, %s68
    %s70 = sphi 0, %s68
    %s71 = sphi 0, %s70
    %s85 = sphi 0, %s71
    %s91 = sphi 0, %s93
    %s94 = sphi 0, %s91
    %s95 = sphi 0, %s94
    %s111 = sphi 0, %s95
    %s117 = sphi 0, %s119
    %s120 = sphi 0, %s117
    %s121 = sphi 0, %s120
    %s137 = sphi 0, %s121
    %s143 = sphi 0, %s145
    %s146 = sphi 0, %s143
    %s147 = sphi 0, %s146
    %s163 = sphi 0, %s147
    %s169 = sphi 0, %s171
    %s172 = sphi 0, %s169
    %s173 = sphi 0, %s172
    %s189 = sphi 0, %s173
  $region4: #{physics_informed_loss.1} parent=0 // loop_header_branch
    %16 = sbr.rel (%p14) target = $region8
  $region5: #{physics_informed_loss.1} parent=0 // loop_body
    %s18 = ssub.s32 %s13, 1
    %s19 = ssub.s32 %s13, 2
    %s20 = sadd.s32 %s13, 1
    %s21 = ssub.s32 %s13, %s20
    %p22 = scmp.eq.s32.totalorder %s21, 0
    %s24 = sadd.s32 %s23, 1
    %s25 = scalar_select %p22, %s23, %s24
    %p28 = pneg %p22
    %p29 = scmp.eq.s32.totalorder %s13, 1
    %p30 = por %p28, %p29
    %p31 = scmp.ne.s32.totalorder %s23, %s26
    %p32 = scmp.eq.s32.totalorder %s13, 0
    %p33 = por %p31, %p32
    %p34 = scmp.ne.s32.totalorder %s23, %s26
    %p35 = scmp.eq.s32.totalorder %s18, 1
    %p36 = por %p34, %p35
    %p37 = scmp.ne.s32.totalorder %s26, %s27
    %p38 = scmp.eq.s32.totalorder %s18, 0
    %p39 = por %p37, %p38
    %p40 = scmp.ne.s32.totalorder %s26, %s27
    %p41 = scmp.eq.s32.totalorder %s19, 1
    %p42 = por %p40, %p41
    %p44 = scmp.ne.s32.totalorder %s27, %s43
    %p45 = scmp.eq.s32.totalorder %s19, 0
    %p46 = por %p44, %p45
    %s48 = sadd.s32 %s47, 1
    %p51 = scmp.eq.s32.totalorder %s13, 1
    %p52 = scmp.ne.s32.totalorder %s47, %s49
    %p53 = scmp.eq.s32.totalorder %s13, 0
    %p54 = por %p52, %p53
    %p55 = scmp.ne.s32.totalorder %s47, %s49
    %p56 = scmp.eq.s32.totalorder %s18, 1
    %p57 = por %p55, %p56
    %p58 = scmp.ne.s32.totalorder %s49, %s50
    %p59 = scmp.eq.s32.totalorder %s18, 0
    %p60 = por %p58, %p59
    %p61 = scmp.ne.s32.totalorder %s49, %s50
    %p62 = scmp.eq.s32.totalorder %s19, 1
    %p63 = por %p61, %p62
    %p65 = scmp.ne.s32.totalorder %s50, %s64
    %p66 = scmp.eq.s32.totalorder %s19, 0
    %p67 = por %p65, %p66
    %s69 = sadd.s32 %s68, 1
    %p72 = scmp.eq.s32.totalorder %s13, 1
    %p73 = scmp.ne.s32.totalorder %s68, %s70
    %p74 = scmp.eq.s32.totalorder %s13, 0
    %p75 = por %p73, %p74
    %p76 = scmp.ne.s32.totalorder %s68, %s70
    %p77 = scmp.eq.s32.totalorder %s18, 1
    %p78 = por %p76, %p77
    %p79 = scmp.ne.s32.totalorder %s70, %s71
    %p80 = scmp.eq.s32.totalorder %s18, 0
    %p81 = por %p79, %p80
    %p82 = scmp.ne.s32.totalorder %s70, %s71
    %p83 = scmp.eq.s32.totalorder %s19, 1
    %p84 = por %p82, %p83
    %p86 = scmp.ne.s32.totalorder %s71, %s85
    %p87 = scmp.eq.s32.totalorder %s19, 0
    %p88 = por %p86, %p87
    %s89 = ssub.s32 %s13, %s20
    %p90 = scmp.eq.s32.totalorder %s89, 0
    %s92 = sadd.s32 %s91, 1
    %s93 = scalar_select %p90, %s91, %s92
    %p96 = pneg %p90
    %p97 = scmp.eq.s32.totalorder %s13, 1
    %p98 = por %p96, %p97
    %p99 = scmp.ne.s32.totalorder %s91, %s94
    %p100 = scmp.eq.s32.totalorder %s13, 0
    %p101 = por %p99, %p100
    %p102 = scmp.ne.s32.totalorder %s91, %s94
    %p103 = scmp.eq.s32.totalorder %s18, 1
    %p104 = por %p102, %p103
    %p105 = scmp.ne.s32.totalorder %s94, %s95
    %p106 = scmp.eq.s32.totalorder %s18, 0
    %p107 = por %p105, %p106
    %p108 = scmp.ne.s32.totalorder %s94, %s95
    %p109 = scmp.eq.s32.totalorder %s19, 1
    %p110 = por %p108, %p109
    %p112 = scmp.ne.s32.totalorder %s95, %s111
    %p113 = scmp.eq.s32.totalorder %s19, 0
    %p114 = por %p112, %p113
    %s115 = ssub.s32 %s13, %s20
    %p116 = scmp.eq.s32.totalorder %s115, 0
    %s118 = sadd.s32 %s117, 1
    %s119 = scalar_select %p116, %s117, %s118
    %p122 = pneg %p116
    %p123 = scmp.eq.s32.totalorder %s13, 1
    %p124 = por %p122, %p123
    %p125 = scmp.ne.s32.totalorder %s117, %s120
    %p126 = scmp.eq.s32.totalorder %s13, 0
    %p127 = por %p125, %p126
    %p128 = scmp.ne.s32.totalorder %s117, %s120
    %p129 = scmp.eq.s32.totalorder %s18, 1
    %p130 = por %p128, %p129
    %p131 = scmp.ne.s32.totalorder %s120, %s121
    %p132 = scmp.eq.s32.totalorder %s18, 0
    %p133 = por %p131, %p132
    %p134 = scmp.ne.s32.totalorder %s120, %s121
    %p135 = scmp.eq.s32.totalorder %s19, 1
    %p136 = por %p134, %p135
    %p138 = scmp.ne.s32.totalorder %s121, %s137
    %p139 = scmp.eq.s32.totalorder %s19, 0
    %p140 = por %p138, %p139
    %s141 = ssub.s32 %s13, %s20
    %p142 = scmp.eq.s32.totalorder %s141, 0
    %s144 = sadd.s32 %s143, 1
    %s145 = scalar_select %p142, %s143, %s144
    %p148 = pneg %p142
    %p149 = scmp.eq.s32.totalorder %s13, 1
    %p150 = por %p148, %p149
    %p151 = scmp.ne.s32.totalorder %s143, %s146
    %p152 = scmp.eq.s32.totalorder %s13, 0
    %p153 = por %p151, %p152
    %p154 = scmp.ne.s32.totalorder %s143, %s146
    %p155 = scmp.eq.s32.totalorder %s18, 1
    %p156 = por %p154, %p155
    %p157 = scmp.ne.s32.totalorder %s146, %s147
    %p158 = scmp.eq.s32.totalorder %s18, 0
    %p159 = por %p157, %p158
    %p160 = scmp.ne.s32.totalorder %s146, %s147
    %p161 = scmp.eq.s32.totalorder %s19, 1
    %p162 = por %p160, %p161
    %p164 = scmp.ne.s32.totalorder %s147, %s163
    %p165 = scmp.eq.s32.totalorder %s19, 0
    %p166 = por %p164, %p165
    %s167 = ssub.s32 %s13, %s20
    %p168 = scmp.eq.s32.totalorder %s167, 0
    %s170 = sadd.s32 %s169, 1
    %s171 = scalar_select %p168, %s169, %s170
    %p174 = pneg %p168
    %p175 = scmp.eq.s32.totalorder %s13, 1
    %p176 = por %p174, %p175
    %p177 = scmp.ne.s32.totalorder %s169, %s172
    %p178 = scmp.eq.s32.totalorder %s13, 0
    %p179 = por %p177, %p178
    %p180 = scmp.ne.s32.totalorder %s169, %s172
    %p181 = scmp.eq.s32.totalorder %s18, 1
    %p182 = por %p180, %p181
    %p183 = scmp.ne.s32.totalorder %s172, %s173
    %p184 = scmp.eq.s32.totalorder %s18, 0
    %p185 = por %p183, %p184
    %p186 = scmp.ne.s32.totalorder %s172, %s173
    %p187 = scmp.eq.s32.totalorder %s19, 1
    %p188 = por %p186, %p187
    %p190 = scmp.ne.s32.totalorder %s173, %s189
    %p191 = scmp.eq.s32.totalorder %s19, 0
    %p192 = por %p190, %p191
    %p193 = scmp.le.s32.totalorder 1, %s13
    %p194 = scmp.lt.s32.totalorder %s13, 3
    %p195 = pnand %p193, %p194
    %p196 = pneg %p195
    // Predicated region
    $region9: #{physics_informed_loss.1} parent=5 // pred_check
      _
    $region10: #{physics_informed_loss.1} parent=5 // pred_check_branch
      %198 = sbr.rel (%p195) target = $region12
    $region11: #{physics_informed_loss.1} parent=5 // pred_region
      %s199 = ssub.s32 %s13, 1
      // Predicated region
      $region13: #{physics_informed_loss.1} parent=11 // pred_check
        %p200 = pneg %p60
      $region14: #{physics_informed_loss.1} parent=11 // pred_check_branch
        %202 = sbr.rel (%p200) target = $region16
      $region15: #{physics_informed_loss.1} parent=11 // pred_region
        _
      $region16: #{physics_informed_loss.1} parent=11 // pred_fallthru
        _
      // Predicated region
      $region17: #{physics_informed_loss.1} parent=11 // pred_check
        %p203 = pneg %p81
      $region18: #{physics_informed_loss.1} parent=11 // pred_check_branch
        %205 = sbr.rel (%p203) target = $region20
      $region19: #{physics_informed_loss.1} parent=11 // pred_region
        _
      $region20: #{physics_informed_loss.1} parent=11 // pred_fallthru
        _
    $region12: #{physics_informed_loss.1} parent=5 // pred_fallthru
      _
    %p206 = scmp.lt.s32.totalorder %s13, 2
    // Predicated region
    $region21: #{physics_informed_loss.1} parent=5 // pred_check
      %p207 = pneg %p206
    $region22: #{physics_informed_loss.1} parent=5 // pred_check_branch
      %209 = sbr.rel (%p207) target = $region24
    $region23: #{physics_informed_loss.1} parent=5 // pred_region
      // Predicated region
      $region25: #{physics_informed_loss.1} parent=23 // pred_check
        %p210 = pneg %p33
      $region26: #{physics_informed_loss.1} parent=23 // pred_check_branch
        %212 = sbr.rel (%p210) target = $region28
      $region27: #{physics_informed_loss.1} parent=23 // pred_region
        %p213 = scmp.lt.s32.totalorder %s13, 1
        %s214 = scalar_select %p213, %s13, 1
        %s215 = smul.addr %s214, 3
        %s216 = smul.addr %s215, 8
        %s217 = scalar_lea.vmem %s0, %s216
      $region28: #{physics_informed_loss.1} parent=23 // pred_fallthru
        _
      // Predicated region
      $region29: #{physics_informed_loss.1} parent=23 // pred_check
        %p218 = pneg %p101
      $region30: #{physics_informed_loss.1} parent=23 // pred_check_branch
        %220 = sbr.rel (%p218) target = $region32
      $region31: #{physics_informed_loss.1} parent=23 // pred_region
        %p221 = scmp.lt.s32.totalorder %s13, 1
        %s222 = scalar_select %p221, %s13, 1
        %s223 = smul.addr %s222, 2
        %s224 = smul.addr %s223, 8
        %s225 = scalar_lea.vmem %s3, %s224
      $region32: #{physics_informed_loss.1} parent=23 // pred_fallthru
        _
      // Predicated region
      $region33: #{physics_informed_loss.1} parent=23 // pred_check
        %p226 = pneg %p127
      $region34: #{physics_informed_loss.1} parent=23 // pred_check_branch
        %228 = sbr.rel (%p226) target = $region36
      $region35: #{physics_informed_loss.1} parent=23 // pred_region
        %p229 = scmp.lt.s32.totalorder %s13, 1
        %s230 = scalar_select %p229, %s13, 1
        %s231 = smul.addr %s230, 2
        %s232 = smul.addr %s231, 8
        %s233 = scalar_lea.vmem %s4, %s232
      $region36: #{physics_informed_loss.1} parent=23 // pred_fallthru
        _
    $region24: #{physics_informed_loss.1} parent=5 // pred_fallthru
      _
    %p234 = scmp.le.s32.totalorder 1, %s13
    %p235 = scmp.lt.s32.totalorder %s13, 3
    %p236 = pnand %p234, %p235
    %p237 = pneg %p236
    // Predicated region
    $region37: #{physics_informed_loss.1} parent=5 // pred_check
      _
    $region38: #{physics_informed_loss.1} parent=5 // pred_check_branch
      %239 = sbr.rel (%p236) target = $region40
    $region39: #{physics_informed_loss.1} parent=5 // pred_region
      %s240 = ssub.s32 %s13, 1
      %p241 = scmp.lt.s32.totalorder %s18, 1
      %s242 = scalar_select %p241, %s18, 1
      %s243 = smul.addr %s242, 3
      %s244 = smul.addr %s243, 8
      %s245 = scalar_lea.vmem %s0, %s244
      %p246 = pneg %p39
      %p247 = pneg %p36
      %p248 = pneg %p60
      %p249 = pneg %p57
      %p250 = pneg %p81
      %p251 = pneg %p78
      %p252 = scmp.lt.s32.totalorder %s18, 1
      %s253 = scalar_select %p252, %s18, 1
      %s254 = smul.addr %s253, 2
      %s255 = smul.addr %s254, 8
      %s256 = scalar_lea.vmem %s3, %s255
      %p257 = pneg %p107
      %p258 = pneg %p104
      %p259 = scmp.lt.s32.totalorder %s18, 1
      %s260 = scalar_select %p259, %s18, 1
      %s261 = smul.addr %s260, 2
      %s262 = smul.addr %s261, 8
      %s263 = scalar_lea.vmem %s4, %s262
      %p264 = pneg %p133
      %p265 = pneg %p130
      %p266 = pneg %p159
      %p267 = pneg %p156
      %p268 = scmp.lt.s32.totalorder %s18, 1
      %s269 = scalar_select %p268, %s18, 1
      %s270 = smul.addr %s269, 8
      %s271 = scalar_lea.vmem %s5, %s270
      %p272 = pneg %p185
      %p273 = pneg %p182
      %p274 = scmp.lt.s32.totalorder %s18, 1
      %s275 = scalar_select %p274, %s18, 1
      %s276 = smul.addr %s275, 8
      %s277 = scalar_lea.vmem %s6, %s276
      %p278 = scmp.lt.s32.totalorder %s18, 1
      %s279 = scalar_select %p278, %s18, 1
      %s280 = smul.addr %s279, 3
      %s281 = smul.addr %s280, 8
      %s282 = scalar_lea.vmem %s0, %s281
      %p283 = scmp.lt.s32.totalorder %s18, 1
      %s284 = scalar_select %p283, %s18, 1
      %s285 = smul.addr %s284, 2
      %s286 = smul.addr %s285, 8
      %s287 = scalar_lea.vmem %s3, %s286
      %p288 = scmp.lt.s32.totalorder %s18, 1
      %s289 = scalar_select %p288, %s18, 1
      %s290 = smul.addr %s289, 2
      %s291 = smul.addr %s290, 8
      %s292 = scalar_lea.vmem %s4, %s291
      %p293 = scmp.lt.s32.totalorder %s18, 1
      %s294 = scalar_select %p293, %s18, 1
      %s295 = smul.addr %s294, 8
      %s296 = scalar_lea.vmem %s5, %s295
      %p297 = scmp.lt.s32.totalorder %s18, 1
      %s298 = scalar_select %p297, %s18, 1
      %s299 = smul.addr %s298, 8
      %s300 = scalar_lea.vmem %s6, %s299
      %v301 = vld [vmem:[%s287] sm:$0xff]
      %v302 = vld [vmem:[%s287 + $0x8] sm:$0xff]
      %v303 = vld [vmem:[%s292] sm:$0xff]
      %v304 = vld [vmem:[%s292 + $0x8] sm:$0xff]
      %v305 = vsub.f32 %v301, %v303
      %v306 = vsub.f32 %v302, %v304
      %v307 = vmul.f32 %v305, %v305
      %v308 = vmul.f32 %v306, %v306
      %vm309 = vcmask 130048
      %v310 = vsel %vm309, %v307, 0.0
      %v311 = vsel %vm309, %v308, 0.0
      %v312 = vadd.f32 %v310, %v311
      %313 = vadd.xlane.f32.xlu0 %v312
      %v314 = vpop.xlane.xlu0 %313
      %v315 = vrot.slane %v314, 4
      %v316 = vadd.f32 %v314, %v315
      %v317 = vrot.slane %v316, 2
      %v318 = vadd.f32 %v316, %v317
      %v319 = vrot.slane %v318, 1
      %v320 = vadd.f32 %v318, %v319
      %s321 = vtos %v320
      %v322 = vld [vmem:[%s282] sm:$0xff]
      %s323 = scalar_lea.vmem %s282, 8
      %v324 = vld [vmem:[%s323] sm:$0xff]
      %v325 = vadd.f32 %v322, %v324
      %s326 = scalar_lea.vmem %s282, 16
      %v327 = vld [vmem:[%s326] sm:$0xff]
      %v328 = vadd.f32 %v325, %v327
      %v329 = vmul.f32 %v328, 0.33333334
      %v330 = vand.u32 2147483647, %v329
      %vm331 = vcmask 97280
      %v332 = vsel %vm331, %v330, -inf
      %v333 = vrot.slane %v332, 4
      %v334 = vmax.f32 %v332, %v333
      %v335 = vrot.slane %v334, 2
      %v336 = vmax.f32 %v334, %v335
      %v337 = vrot.slane %v336, 1
      %v338 = vmax.f32 %v336, %v337
      %v339 = vsel %vm331, %v338, -inf
      %340 = vmax.xlane.f32.xlu0 %v339
      %v341 = vpop.xlane.xlu0 %340
      %v342 = vmax.f32 %v341, 1e-10
      %v343 = vrcp.pop %v342
      %v344 = vmul.f32 %v329, %v343
      %v345 = vld [vmem:[%s1] sm:$0xff]
      %v346 = vld [vmem:[%s1 + $0x8] sm:$0xf]
      %v348 = vsel %vm331, %v344, 0
      %vm350 = vcmask 1043456
      %v352 = vsel %vm350, %v346, 0
      %354 = vmatprep.subr.mxu0 0.0
      %355 = vmatpush1.msra.mxu0 %v345
      %356 = vmatprep.subr.mxu0 0.0
      %357 = vmatpush1.msra.mxu0 %v352
      %358 = vmatprep.subr.mxu0 0.0
      %359 = vmatpush1.msra.mxu0 0.0
      %360 = vmatprep.subr.mxu0 0.0
      %361 = vmatpush1.msra.mxu0 0.0
      %362 = vmatprep.subr.mxu0 0.0
      %363 = vmatpush1.msra.mxu0 0.0
      %364 = vmatprep.subr.mxu0 0.0
      %365 = vmatpush1.msra.mxu0 0.0
      %366 = vmatprep.subr.mxu0 0.0
      %367 = vmatpush1.msra.mxu0 0.0
      %368 = vmatprep.subr.mxu0 0.0
      %369 = vmatpush1.msra.mxu0 0.0
      %370 = vmatprep.subr.mxu0 0.0
      %371 = vmatpush1.msra.mxu0 0.0
      %372 = vmatprep.subr.mxu0 0.0
      %373 = vmatpush1.msra.mxu0 0.0
      %374 = vmatprep.subr.mxu0 0.0
      %375 = vmatpush1.msra.mxu0 0.0
      %376 = vmatprep.subr.mxu0 0.0
      %377 = vmatpush1.msra.mxu0 0.0
      %378 = vmatprep.subr.mxu0 0.0
      %379 = vmatpush1.msra.mxu0 0.0
      %380 = vmatprep.subr.mxu0 0.0
      %381 = vmatpush1.msra.mxu0 0.0
      %382 = vmatprep.subr.mxu0 0.0
      %383 = vmatpush1.msra.mxu0 0.0
      %384 = vmatprep.subr.mxu0 0.0
      %385 = vmatpush1.msra.mxu0 0.0
      %386 = vmatprep.subr.mxu0 0.0
      %387 = vmatpush1.msra.mxu0 0.0
      %388 = vmatprep.subr.mxu0 0.0
      %389 = vmatpush1.msra.mxu0 0.0
      %390 = vmatprep.subr.mxu0 0.0
      %391 = vmatpush1.msra.mxu0 0.0
      %392 = vmatprep.subr.mxu0 0.0
      %393 = vmatpush1.msra.mxu0 0.0
      %394 = vmatprep.subr.mxu0 0.0
      %395 = vmatpush1.msra.mxu0 0.0
      %396 = vmatprep.subr.mxu0 0.0
      %397 = vmatpush1.msra.mxu0 0.0
      %398 = vmatprep.subr.mxu0 0.0
      %399 = vmatpush1.msra.mxu0 0.0
      %400 = vmatprep.subr.mxu0 0.0
      %401 = vmatpush1.msra.mxu0 0.0
      %402 = vmatprep.subr.mxu0 0.0
      %403 = vmatpush1.msra.mxu0 0.0
      %404 = vmatprep.subr.mxu0 0.0
      %405 = vmatpush1.msra.mxu0 0.0
      %406 = vmatprep.subr.mxu0 0.0
      %407 = vmatpush1.msra.mxu0 0.0
      %408 = vmatprep.subr.mxu0 0.0
      %409 = vmatpush1.msra.mxu0 0.0
      %410 = vmatprep.subr.mxu0 0.0
      %411 = vmatpush1.msra.mxu0 0.0
      %412 = vmatprep.subr.mxu0 0.0
      %413 = vmatpush1.msra.mxu0 0.0
      %414 = vmatprep.subr.mxu0 0.0
      %415 = vmatpush1.msra.mxu0 0.0
      %416 = vmatprep.subr.mxu0 0.0
      %417 = vmatpush1.msra.mxu0 0.0
      %418 = vmatprep.mubr.f32.mxu0 0.0
      %419 = vmatmul.mubr.f32.gmra.mrb[0].mxu0 %v348
      %v420 = vpop.f32.mrb[0].mxu0
      %v421 = vadd.f32 0.0, %v420
      %v422 = vpop.f32.mrb[0].mxu0
      %423 = vdwg.mxu0
      %v424 = vld [vmem:[%s2] sm:$0xff]
      %v425 = vld [vmem:[%s2 + $0x8] sm:$0xf]
      %v427 = vsel %vm350, %v425, 0
      %429 = vmatprep.subr.mxu0 0.0
      %430 = vmatpush1.msra.mxu0 %v424
      %431 = vmatprep.subr.mxu0 0.0
      %432 = vmatpush1.msra.mxu0 %v427
      %433 = vmatprep.subr.mxu0 0.0
      %434 = vmatpush1.msra.mxu0 0.0
      %435 = vmatprep.subr.mxu0 0.0
      %436 = vmatpush1.msra.mxu0 0.0
      %437 = vmatprep.subr.mxu0 0.0
      %438 = vmatpush1.msra.mxu0 0.0
      %439 = vmatprep.subr.mxu0 0.0
      %440 = vmatpush1.msra.mxu0 0.0
      %441 = vmatprep.subr.mxu0 0.0
      %442 = vmatpush1.msra.mxu0 0.0
      %443 = vmatprep.subr.mxu0 0.0
      %444 = vmatpush1.msra.mxu0 0.0
      %445 = vmatprep.subr.mxu0 0.0
      %446 = vmatpush1.msra.mxu0 0.0
      %447 = vmatprep.subr.mxu0 0.0
      %448 = vmatpush1.msra.mxu0 0.0
      %449 = vmatprep.subr.mxu0 0.0
      %450 = vmatpush1.msra.mxu0 0.0
      %451 = vmatprep.subr.mxu0 0.0
      %452 = vmatpush1.msra.mxu0 0.0
      %453 = vmatprep.subr.mxu0 0.0
      %454 = vmatpush1.msra.mxu0 0.0
      %455 = vmatprep.subr.mxu0 0.0
      %456 = vmatpush1.msra.mxu0 0.0
      %457 = vmatprep.subr.mxu0 0.0
      %458 = vmatpush1.msra.mxu0 0.0
      %459 = vmatprep.subr.mxu0 0.0
      %460 = vmatpush1.msra.mxu0 0.0
      %461 = vmatprep.subr.mxu0 0.0
      %462 = vmatpush1.msra.mxu0 0.0
      %463 = vmatprep.subr.mxu0 0.0
      %464 = vmatpush1.msra.mxu0 0.0
      %465 = vmatprep.subr.mxu0 0.0
      %466 = vmatpush1.msra.mxu0 0.0
      %467 = vmatprep.subr.mxu0 0.0
      %468 = vmatpush1.msra.mxu0 0.0
      %469 = vmatprep.subr.mxu0 0.0
      %470 = vmatpush1.msra.mxu0 0.0
      %471 = vmatprep.subr.mxu0 0.0
      %472 = vmatpush1.msra.mxu0 0.0
      %473 = vmatprep.subr.mxu0 0.0
      %474 = vmatpush1.msra.mxu0 0.0
      %475 = vmatprep.subr.mxu0 0.0
      %476 = vmatpush1.msra.mxu0 0.0
      %477 = vmatprep.subr.mxu0 0.0
      %478 = vmatpush1.msra.mxu0 0.0
      %479 = vmatprep.subr.mxu0 0.0
      %480 = vmatpush1.msra.mxu0 0.0
      %481 = vmatprep.subr.mxu0 0.0
      %482 = vmatpush1.msra.mxu0 0.0
      %483 = vmatprep.subr.mxu0 0.0
      %484 = vmatpush1.msra.mxu0 0.0
      %485 = vmatprep.subr.mxu0 0.0
      %486 = vmatpush1.msra.mxu0 0.0
      %487 = vmatprep.subr.mxu0 0.0
      %488 = vmatpush1.msra.mxu0 0.0
      %489 = vmatprep.subr.mxu0 0.0
      %490 = vmatpush1.msra.mxu0 0.0
      %491 = vmatprep.subr.mxu0 0.0
      %492 = vmatpush1.msra.mxu0 0.0
      %493 = vmatprep.mubr.f32.mxu0 0.0
      %494 = vmatmul.mubr.f32.gmra.mrb[0].mxu0 %v348
      %v495 = vpop.f32.mrb[0].mxu0
      %v496 = vadd.f32 0.0, %v495
      %v497 = vpop.f32.mrb[0].mxu0
      %498 = vdwg.mxu0
      %v499 = vmul.f32 %v421, 2.0
      %v501 = vrot.slane %v499, 7
      %v503 = vsub.f32 %v421, %v501
      %v505 = vrot.slane %v421, 6
      %v507 = vadd.f32 %v503, %v505
      %v508 = vmul.f32 %v507, 250000.0
      %v509 = vmul.f32 %v301, 3500.0
      %v510 = vmul.f32 %v302, 3500.0
      %v511 = vadd.f32 %v509, 1500.0
      %v512 = vadd.f32 %v510, 1500.0
      %v513 = vmax.f32 %v511, 100.0
      %v514 = vmax.f32 %v512, 100.0
      %v515 = vmin.f32 %v513, 10000.0
      %v516 = vmin.f32 %v514, 10000.0
      %v517 = vmul.f32 %v515, %v515
      %v518 = vmul.f32 %v516, %v516
      %v519 = vrcp.pop %v517
      %v520 = vmul.f32 1.0, %v519
      %v521 = vrcp.pop %v518
      %v522 = vmul.f32 1.0, %v521
      %vm525 = vcmask 1046528
      %v526 = vrot.slane %v520, 1
      %v527 = vrot.slane %v522, 1
      %v528 = vsel %vm525, %v526, %v527
      %vm531 = vcmask 121864
      %v532 = vsel %vm531, %v528, 0.0
      %vm533 = vcmask 119816
      %v534 = vsel %vm533, %v527, 0.0
      %v535 = vadd.f32 %v532, %v534
      %v536 = vrot.slane %v535, 4
      %v537 = vadd.f32 %v535, %v536
      %v538 = vrot.slane %v537, 2
      %v539 = vadd.f32 %v537, %v538
      %v540 = vrot.slane %v539, 1
      %v541 = vadd.f32 %v539, %v540
      %v542 = vmul.f32 %v520, %v520
      %v543 = vmul.f32 %v522, %v522
      %v546 = vrot.slane %v542, 1
      %v547 = vrot.slane %v543, 1
      %v548 = vsel %vm525, %v546, %v547
      %v551 = vsel %vm531, %v548, 0.0
      %v552 = vsel %vm533, %v547, 0.0
      %v553 = vadd.f32 %v551, %v552
      %v554 = vrot.slane %v553, 4
      %v555 = vadd.f32 %v553, %v554
      %v556 = vrot.slane %v555, 2
      %v557 = vadd.f32 %v555, %v556
      %v558 = vrot.slane %v557, 1
      %v559 = vadd.f32 %v557, %v558
      %v560 = vmul.f32 %v496, %v496
      %vm561 = vcmask 111616
      %v562 = vsel %vm561, %v560, 0.0
      %563 = vadd.xlane.f32.xlu0 %v562
      %v564 = vpop.xlane.xlu0 %563
      %v565 = vrot.slane %v564, 4
      %v566 = vadd.f32 %v564, %v565
      %v567 = vrot.slane %v566, 2
      %v568 = vadd.f32 %v566, %v567
      %v569 = vrot.slane %v568, 1
      %v570 = vadd.f32 %v568, %v569
      %s571 = vtos %v570
      %s572 = smul.f32 %s571, 14.0
      %v574 = vrot.slane %v508, 2
      %v576 = vmul.f32 %v496, %v574
      %578 = vrot.lane.b32.xlu0 %v541, 127
      %v579 = vpop.permute.xlu0 %578
      %v581 = vmul.f32 %v576, %v579
      %v582 = vsel %vm561, %v581, 0.0
      %583 = vadd.xlane.f32.xlu0 %v582
      %v584 = vpop.xlane.xlu0 %583
      %v585 = vrot.slane %v584, 4
      %v586 = vadd.f32 %v584, %v585
      %v587 = vrot.slane %v586, 2
      %v588 = vadd.f32 %v586, %v587
      %v589 = vrot.slane %v588, 1
      %v590 = vadd.f32 %v588, %v589
      %s591 = vtos %v590
      %s592 = smul.f32 %s591, 2.0
      %s593 = ssub.f32 %s572, %s592
      %v594 = vmul.f32 %v508, %v508
      %596 = vrot.lane.b32.xlu0 %v559, 127
      %v597 = vpop.permute.xlu0 %596
      %v599 = vmul.f32 %v594, %v597
      %v601 = vrot.slane %v599, 2
      %v603 = vsel %vm561, %v601, 0.0
      %604 = vadd.xlane.f32.xlu0 %v603
      %v605 = vpop.xlane.xlu0 %604
      %v606 = vrot.slane %v605, 4
      %v607 = vadd.f32 %v605, %v606
      %v608 = vrot.slane %v607, 2
      %v609 = vadd.f32 %v607, %v608
      %v610 = vrot.slane %v609, 1
      %v611 = vadd.f32 %v609, %v610
      %s612 = vtos %v611
      %s613 = sadd.f32 %s593, %s612
      %v614 = vstv %s321
      %615 = vst [vmem:[%s296] sm:$0xff] %v614
      %v616 = vstv %s613
      %617 = vst [vmem:[%s300] sm:$0xff] %v616
      %p618 = scmp.lt.s32.totalorder %s18, 1
      %s619 = scalar_select %p618, %s18, 1
      %s620 = smul.addr %s619, 8
      %s621 = scalar_lea.vmem %s5, %s620
      %p622 = scmp.lt.s32.totalorder %s18, 1
      %s623 = scalar_select %p622, %s18, 1
      %s624 = smul.addr %s623, 8
      %s625 = scalar_lea.vmem %s6, %s624
      // Predicated region
      $region41: #{physics_informed_loss.1} parent=39 // pred_check
        %p626 = pneg %p156
      $region42: #{physics_informed_loss.1} parent=39 // pred_check_branch
        %628 = sbr.rel (%p626) target = $region44
      $region43: #{physics_informed_loss.1} parent=39 // pred_region
        _
      $region44: #{physics_informed_loss.1} parent=39 // pred_fallthru
        _
      // Predicated region
      $region45: #{physics_informed_loss.1} parent=39 // pred_check
        %p629 = pneg %p182
      $region46: #{physics_informed_loss.1} parent=39 // pred_check_branch
        %631 = sbr.rel (%p629) target = $region48
      $region47: #{physics_informed_loss.1} parent=39 // pred_region
        _
      $region48: #{physics_informed_loss.1} parent=39 // pred_fallthru
        _
    $region40: #{physics_informed_loss.1} parent=5 // pred_fallthru
      _
    %p632 = scmp.le.s32.totalorder 2, %s13
    // Predicated region
    $region49: #{physics_informed_loss.1} parent=5 // pred_check
      %p633 = pneg %p632
    $region50: #{physics_informed_loss.1} parent=5 // pred_check_branch
      %635 = sbr.rel (%p633) target = $region52
    $region51: #{physics_informed_loss.1} parent=5 // pred_region
      %s636 = ssub.s32 %s13, 2
      // Predicated region
      $region53: #{physics_informed_loss.1} parent=51 // pred_check
        %p637 = pneg %p162
      $region54: #{physics_informed_loss.1} parent=51 // pred_check_branch
        %639 = sbr.rel (%p637) target = $region56
      $region55: #{physics_informed_loss.1} parent=51 // pred_region
        %p640 = scmp.lt.s32.totalorder %s19, 1
        %s641 = scalar_select %p640, %s19, 1
        %s642 = smul.addr %s641, 8
        %s643 = scalar_lea.vmem %s5, %s642
      $region56: #{physics_informed_loss.1} parent=51 // pred_fallthru
        _
      // Predicated region
      $region57: #{physics_informed_loss.1} parent=51 // pred_check
        %p644 = pneg %p188
      $region58: #{physics_informed_loss.1} parent=51 // pred_check_branch
        %646 = sbr.rel (%p644) target = $region60
      $region59: #{physics_informed_loss.1} parent=51 // pred_region
        %p647 = scmp.lt.s32.totalorder %s19, 1
        %s648 = scalar_select %p647, %s19, 1
        %s649 = smul.addr %s648, 8
        %s650 = scalar_lea.vmem %s6, %s649
      $region60: #{physics_informed_loss.1} parent=51 // pred_fallthru
        _
    $region52: #{physics_informed_loss.1} parent=5 // pred_fallthru
      _
  $region6: #{physics_informed_loss.1} parent=0 // loop_footer
    %s17 = sadd.s32 1, %s13
  $region7: #{physics_informed_loss.1} parent=0 // loop_footer_branch
    %12 = sbr.rel target = $region3
  $region8: #{physics_informed_loss.1} parent=0 // loop_exit
    _

</llo_original>
